<compile_context>
chip_gen: v7x
topology: tpu7x:2x2x1
jax: 0.10.0
libtpu: 0.0.40
codegen_flags: <defaults>
</compile_context>

<pallas_src>
import functools
import math

import jax
import jax.numpy as jnp
from jax import lax
from jax.experimental import pallas as pl
from jax.experimental.pallas import tpu as pltpu


# --------------------------------------------------------------------------- expert + combine kernel
def moe_expert_kernel(active_ref, g_ref, x_ref, w1_ref, b1_ref, w2_ref, b2sc_ref, wsc_ref,
                      y_ref, acc_ref, *, seq_len):
    i = pl.program_id(0)                 # batch-block index ("parallel": shards across v7x cores)
    e = pl.program_id(1)                 # expert index      ("arbitrary": accumulated in scratch)
    n_experts = pl.num_programs(1)

    @pl.when(e == 0)
    def _init():
        acc_ref[...] = jnp.zeros_like(acc_ref)

    # Skip experts that no example in this batch block was routed to (exact top-k skip at Bt=1).
    @pl.when(active_ref[i * n_experts + e] != 0)
    def _compute():
        xb = x_ref[0]                    # [Bt*L, Cin] bf16 — center tap and 1x1 shortcut input
        m = xb.shape[0]

        # Row-position masks: zero the conv taps that would cross an example boundary inside the
        # batch-stacked row axis (this also provides the zero padding at the sequence ends).
        rows = lax.broadcasted_iota(jnp.int32, (m, 1), 0)
        pos = rows % seq_len
        not_first = pos != 0                           # row l-1 exists within this example
        not_last = pos != seq_len - 1                  # row l+1 exists within this example

        # Shifted taps via XLU rolls + VPU masks (no halo scratch, no misaligned VMEM stores).
        # Rolls are done in 32-bit to avoid packed-bf16 sublane rotation.
        x32 = xb.astype(jnp.float32)
        x_lm = jnp.where(not_first, pltpu.roll(x32, 1, axis=0), 0.0).astype(jnp.bfloat16)   # x[l-1]
        x_rp = jnp.where(not_last, pltpu.roll(x32, m - 1, axis=0), 0.0).astype(jnp.bfloat16)  # x[l+1]

        # conv1 (k=3, pad=1): three accumulating MXU matmuls (bf16 operands, f32 accumulation).
        w1_e = w1_ref[e]                               # [3, Cin, Cb] bf16, VMEM-resident
        h = jnp.dot(x_lm, w1_e[0], preferred_element_type=jnp.float32)
        h = h + jnp.dot(xb, w1_e[1], preferred_element_type=jnp.float32)
        h = h + jnp.dot(x_rp, w1_e[2], preferred_element_type=jnp.float32)
        h = jnp.maximum(h + b1_ref[e], 0.0)            # [Bt*L, Cb] f32

        hb = h.astype(jnp.bfloat16)                    # cast once, right after the ReLU
        h_lm = jnp.where(not_first, pltpu.roll(h, 1, axis=0), 0.0).astype(jnp.bfloat16)     # h[l-1]
        h_rp = jnp.where(not_last, pltpu.roll(h, m - 1, axis=0), 0.0).astype(jnp.bfloat16)  # h[l+1]

        # conv2 (k=3, pad=1) + 1x1 projection shortcut: four accumulating MXU matmuls.
        w2_e = w2_ref[e]                               # [3, Cb, Cout] bf16
        out = jnp.dot(h_lm, w2_e[0], preferred_element_type=jnp.float32)
        out = out + jnp.dot(hb, w2_e[1], preferred_element_type=jnp.float32)
        out = out + jnp.dot(h_rp, w2_e[2], preferred_element_type=jnp.float32)
        out = out + jnp.dot(xb, wsc_ref[e], preferred_element_type=jnp.float32)
        out = jnp.maximum(out + b2sc_ref[e], 0.0)      # [Bt*L, Cout] f32

        acc_ref[...] += g_ref[0, 0] * out              # per-row gate weighting (padding rows: g=0)

    @pl.when(e == n_experts - 1)
    def _flush():
        y_ref[0] = acc_ref[...]                        # single HBM writeback per batch block


def moe_experts_combine(x_blc, gates, w1, b1, w2, b2, wsc, bsc, *, rows_target=256):
    B, L, Cin = x_blc.shape
    E = w1.shape[0]
    Cb = w1.shape[-1]
    Cout = w2.shape[-1]

    # Batch blocking: aim for Bt*L ~ 256 matmul rows (fills the 256-wide MXU on v6e/v7x,
    # >=128 on v5e) while keeping >=2 blocks on the 'parallel' axis when B allows (v7x 2 TCs).
    Bt = max(1, min(B, rows_target // max(1, L)))
    if pl.cdiv(B, Bt) < 2 and B >= 2:
        Bt = pl.cdiv(B, 2)
    nB = pl.cdiv(B, Bt)
    B_pad = nB * Bt
    BtL = Bt * L

    # Raw activations, bf16, batch-blocked: [nB, Bt*L, Cin]  (no im2col -> 3x less HBM read).
    x_p = jnp.pad(x_blc, ((0, B_pad - B), (0, 0), (0, 0))).astype(jnp.bfloat16)
    x_blk = x_p.reshape(nB, BtL, Cin)

    # Gates: per-row weight vector [E, nB, Bt*L, 1] plus per-(block, expert) activity flags (SMEM).
    g_pad = jnp.pad(gates.astype(jnp.float32), ((0, B_pad - B), (0, 0)))        # [B_pad, E]
    g_rows = jnp.repeat(g_pad, L, axis=0).reshape(nB, BtL, E)
    g_rows = jnp.transpose(g_rows, (2, 0, 1))[..., None]                        # [E, nB, Bt*L, 1]
    block_active = (g_pad.reshape(nB, Bt, E) > 0).any(axis=1)
    block_active = block_active.astype(jnp.int32).reshape(nB * E)

    # Expert weights: bf16 on the MXU, f32 biases; conv2 bias and shortcut bias pre-summed.
    w1b = w1.astype(jnp.bfloat16)                                               # [E, 3, Cin, Cb]
    w2b = w2.astype(jnp.bfloat16)                                               # [E, 3, Cb, Cout]
    wscb = wsc.astype(jnp.bfloat16)                                             # [E, Cin, Cout]
    b1r = b1.reshape(E, 1, Cb).astype(jnp.float32)
    b2r = (b2 + bsc).reshape(E, 1, Cout).astype(jnp.float32)

    # VMEM budget derived from block footprints (double-buffered inputs/outputs + scratch),
    # capped below the strictest generation budget (v7x: 64 MiB physical per TensorCore).
    def _tile_bytes(shape, bpe):
        s = list(shape)
        s[-1] = -(-s[-1] // 128) * 128
        if len(s) >= 2:
            s[-2] = -(-s[-2] // 8) * 8
        n = 1
        for d in s:
            n *= d
        return n * bpe

    need = (2 * _tile_bytes((BtL, Cin), 2) + 2 * _tile_bytes((BtL, 1), 4)
            + 2 * _tile_bytes((BtL, Cout), 4) + _tile_bytes((BtL, Cout), 4)
            + 2 * (_tile_bytes((E * 3, Cin, Cb), 2) + _tile_bytes((E * 3, Cb, Cout), 2)
                   + _tile_bytes((E, Cin, Cout), 2) + _tile_bytes((E, 1, Cb), 4)
                   + _tile_bytes((E, 1, Cout), 4)))
    vmem_limit = int(min(max(2 * need, 4 * 2**20), 48 * 2**20))

    y_blk = pl.pallas_call(
        functools.partial(moe_expert_kernel, seq_len=L),
        out_shape=jax.ShapeDtypeStruct((nB, BtL, Cout), jnp.float32),
        grid=(nB, E),
        in_specs=[
            pl.BlockSpec(memory_space=pltpu.MemorySpace.SMEM),                   # block_active flags
            pl.BlockSpec((1, 1, BtL, 1), lambda i, e: (e, i, 0, 0)),             # per-row gates
            pl.BlockSpec((1, BtL, Cin), lambda i, e: (i, 0, 0)),                 # raw activations
            pl.BlockSpec((E, 3, Cin, Cb), lambda i, e: (0, 0, 0, 0)),            # w1  (VMEM-resident)
            pl.BlockSpec((E, 1, Cb), lambda i, e: (0, 0, 0)),                    # b1
            pl.BlockSpec((E, 3, Cb, Cout), lambda i, e: (0, 0, 0, 0)),           # w2
            pl.BlockSpec((E, 1, Cout), lambda i, e: (0, 0, 0)),                  # b2 + bsc
            pl.BlockSpec((E, Cin, Cout), lambda i, e: (0, 0, 0)),                # wsc (1x1 shortcut)
        ],
        out_specs=pl.BlockSpec((1, BtL, Cout), lambda i, e: (i, 0, 0)),
        scratch_shapes=[pltpu.VMEM((BtL, Cout), jnp.float32)],                   # combine accumulator
        compiler_params=pltpu.CompilerParams(
            dimension_semantics=("parallel", "arbitrary"),
            vmem_limit_bytes=vmem_limit,
        ),
    )(block_active, g_rows, x_blk, w1b, b1r, w2b, b2r, wscb)

    return y_blk.reshape(B_pad, L, Cout)[:B]


# --------------------------------------------------------------------------- gating math (tiny, XLA)
def _normal_cdf(x):
    return 0.5 * (1.0 + lax.erf(x / math.sqrt(2.0)))


def _prob_in_top_k(clean_values, noisy_values, noise_stddev, noisy_top_values, k):
    threshold_if_in = noisy_top_values[:, k][:, None]
    threshold_if_out = noisy_top_values[:, k - 1][:, None]
    is_in = noisy_values > threshold_if_in
    prob_if_in = _normal_cdf((clean_values - threshold_if_in) / noise_stddev)
    prob_if_out = _normal_cdf((clean_values - threshold_if_out) / noise_stddev)
    return jnp.where(is_in, prob_if_in, prob_if_out)


def cv_squared(x):
    eps = 1e-10
    if x.shape[0] == 1:
        return jnp.zeros((), jnp.float32)
    x = x.astype(jnp.float32)
    return jnp.var(x, ddof=1) / (jnp.mean(x) ** 2 + eps)       # torch .var() is unbiased


def noisy_top_k_gating(x_blc, w_gate, w_noise, key, *, train=True, noise_epsilon=1e-2,
                       temperature=1.0, k=2, num_experts=4, noisy_gating=True):
    gate_x = jnp.mean(x_blc, axis=1)                            # AdaptiveAvgPool1d((1,)) + flatten
    clean_logits = gate_x @ w_gate
    if noisy_gating:
        raw_noise_stddev = gate_x @ w_noise
        noise_stddev = (jax.nn.softplus(raw_noise_stddev) + noise_epsilon) * float(train)
        noise = jax.random.normal(key, clean_logits.shape, dtype=clean_logits.dtype)
        noisy_logits = clean_logits + noise * noise_stddev
        logits = noisy_logits
    else:
        logits = clean_logits
    logits = jax.nn.softmax(logits / temperature, axis=1)

    m = min(k + 1, num_experts)
    top_logits, top_indices = lax.top_k(logits, m)
    top_k_logits = top_logits[:, :k]
    top_k_indices = top_indices[:, :k]
    top_k_gates = jax.nn.softmax(top_k_logits, axis=1)

    B = logits.shape[0]
    gates = jnp.zeros_like(logits).at[jnp.arange(B)[:, None], top_k_indices].set(top_k_gates)

    if noisy_gating and k < num_experts and train:
        # TODO(synk): the reference also takes this branch at eval, where noise_stddev==0
        #             divides by zero; gated on `train` to stay finite.
        load = _prob_in_top_k(clean_logits, noisy_logits, noise_stddev, top_logits, k).sum(0)
    else:
        load = (gates > 0).sum(0).astype(jnp.float32)
    return gates, load


# --------------------------------------------------------------------------- forward
def moe_forward(x_ncw, params, key, *, train=True, loss_coef=0.01,
                k=2, num_experts=4, temperature=1.0):
    x_blc = jnp.transpose(x_ncw, (0, 2, 1))                     # NCW -> NLC (channels-last)
    gates, load = noisy_top_k_gating(x_blc, params["w_gate"], params["w_noise"], key,
                                     train=train, temperature=temperature,
                                     k=k, num_experts=num_experts)
    importance = gates.sum(0)
    loss = (cv_squared(importance) + cv_squared(load)) * loss_coef

    y_blc = moe_experts_combine(x_blc, gates,
                                params["w1"], params["b1"],
                                params["w2"], params["b2"],
                                params["wsc"], params["bsc"])
    return jnp.transpose(y_blc, (0, 2, 1)), loss                # back to NCW


# --------------------------------------------------------------------------- params (deterministic)
def init_params(key, input_size, output_size, bottleneck, num_experts):
    k1, k2, k3, k4, k5, k6 = jax.random.split(key, 6)
    # One ResBlock's weights; every expert gets a copy (matches load_state_dict in __init__).
    # Tap index t: t=0 multiplies x[l-1], t=1 x[l], t=2 x[l+1]  (PyTorch conv1d k=3, pad=1 order).
    w1 = jax.random.normal(k1, (3, input_size, bottleneck), jnp.float32) * 0.1   # [K, Cin, Cb]
    b1 = jax.random.normal(k2, (bottleneck,), jnp.float32) * 0.1
    w2 = jax.random.normal(k3, (3, bottleneck, output_size), jnp.float32) * 0.1  # [K, Cb, Cout]
    b2 = jax.random.normal(k4, (output_size,), jnp.float32) * 0.1
    wsc = jax.random.normal(k5, (input_size, output_size), jnp.float32) * 0.1    # 1x1 shortcut
    bsc = jax.random.normal(k6, (output_size,), jnp.float32) * 0.1

    tile = lambda a: jnp.broadcast_to(a[None], (num_experts,) + a.shape)
    return {
        "w_gate": jnp.zeros((input_size, num_experts), jnp.float32),   # zeros, as in __init__
        "w_noise": jnp.zeros((input_size, num_experts), jnp.float32),  # zeros, as in __init__
        "w1": tile(w1), "b1": tile(b1),
        "w2": tile(w2), "b2": tile(b2),
        "wsc": tile(wsc), "bsc": tile(bsc),
    }


# --------------------------------------------------------------------------- pure-JAX reference
def experts_combine_reference(x_blc, gates, w1, b1, w2, b2, wsc, bsc):
    """Direct ResBlock-MoE combine, mirroring the kernel's bf16 rounding, for validation."""
    r = lambda a: a.astype(jnp.bfloat16).astype(jnp.float32)
    x = r(x_blc)
    B, L, _ = x.shape
    E = gates.shape[1]
    Cout = w2.shape[-1]
    xp = jnp.pad(x, ((0, 0), (1, 1), (0, 0)))
    y = jnp.zeros((B, L, Cout), jnp.float32)
    for e in range(E):
        h = sum(jnp.einsum("blc,cd->bld", xp[:, t:t + L], r(w1[e, t])) for t in range(3)) + b1[e]
        h = r(jnp.maximum(h, 0.0))
        hp = jnp.pad(h, ((0, 0), (1, 1), (0, 0)))
        y2 = sum(jnp.einsum("bld,de->ble", hp[:, t:t + L], r(w2[e, t])) for t in range(3))
        ysc = jnp.einsum("blc,ce->ble", x, r(wsc[e]))
        out_e = jnp.maximum(y2 + ysc + b2[e] + bsc[e], 0.0)
        y = y + gates[:, e][:, None, None] * out_e
    return y


if __name__ == "__main__":
    key = jax.random.PRNGKey(0)
    kx, kp, kn = jax.random.split(key, 3)

    B, Cin, L = 2, 8, 16          # input:  [batch, input_size, length]  (NCW)
    Cout, bottleneck = 16, 8
    num_experts, topk = 4, 2

    x = jax.random.normal(kx, (B, Cin, L), jnp.float32)
    params = init_params(kp, Cin, Cout, bottleneck, num_experts)

    y, loss = moe_forward(x, params, kn, train=True, loss_coef=0.01,
                          k=topk, num_experts=num_experts, temperature=1.0)
    jax.block_until_ready((y, loss))

    assert y.shape == (B, Cout, L), y.shape
    assert loss.shape == (), loss.shape
    assert bool(jnp.isfinite(loss))

    # Validate the Pallas expert path against the pure-JAX reference (same gates, same key).
    x_blc = jnp.transpose(x, (0, 2, 1))
    gates, _ = noisy_top_k_gating(x_blc, params["w_gate"], params["w_noise"], kn,
                                  train=True, k=topk, num_experts=num_experts, temperature=1.0)
    y_ref = experts_combine_reference(x_blc, gates, params["w1"], params["b1"],
                                      params["w2"], params["b2"],
                                      params["wsc"], params["bsc"])
    err = float(jnp.max(jnp.abs(y - jnp.transpose(y_ref, (0, 2, 1)))))
    assert err < 1e-2, f"kernel vs reference max abs err = {err}"

    print("KERNEL_OK")
</pallas_src>

<mosaic_0001>
module attributes {stable_mosaic.version = 11 : i64} {
  func.func @moe_expert_kernel(%arg0: i32, %arg1: i32, %arg2: memref<8xi32, #tpu.memory_space<smem>>, %arg3: memref<1x1x16x1xf32, #tpu.memory_space<vmem>>, %arg4: memref<1x16x8xbf16, #tpu.memory_space<vmem>>, %arg5: memref<4x3x8x8xbf16, #tpu.memory_space<vmem>>, %arg6: memref<4x1x8xf32, #tpu.memory_space<vmem>>, %arg7: memref<4x3x8x16xbf16, #tpu.memory_space<vmem>>, %arg8: memref<4x1x16xf32, #tpu.memory_space<vmem>>, %arg9: memref<4x8x16xbf16, #tpu.memory_space<vmem>>, %arg10: memref<1x16x16xf32, #tpu.memory_space<vmem>>, %arg11: memref<16x16xf32, #tpu.memory_space<vmem>>) attributes {dimension_semantics = [#tpu.dimension_semantics<parallel>, #tpu.dimension_semantics<arbitrary>], iteration_bounds = array<i64: 2, 4>, scalar_prefetch = 0 : i64, scratch_operands = 1 : i64, tpu.core_type = #tpu.core_type<tc>, window_params = [{transform_indices = @transform_0, window_bounds = array<i64: 8>}, {transform_indices = @transform_1, window_bounds = array<i64: 1, 1, 16, 1>}, {transform_indices = @transform_2, window_bounds = array<i64: 1, 16, 8>}, {pipeline_mode = #tpu.pipeline_mode<synchronous>, transform_indices = @transform_3, window_bounds = array<i64: 4, 3, 8, 8>}, {pipeline_mode = #tpu.pipeline_mode<synchronous>, transform_indices = @transform_4, window_bounds = array<i64: 4, 1, 8>}, {pipeline_mode = #tpu.pipeline_mode<synchronous>, transform_indices = @transform_5, window_bounds = array<i64: 4, 3, 8, 16>}, {pipeline_mode = #tpu.pipeline_mode<synchronous>, transform_indices = @transform_6, window_bounds = array<i64: 4, 1, 16>}, {pipeline_mode = #tpu.pipeline_mode<synchronous>, transform_indices = @transform_7, window_bounds = array<i64: 4, 8, 16>}, {transform_indices = @transform_8, window_bounds = array<i64: 1, 16, 16>}]} {
    %c0_i32 = arith.constant 0 : i32
    %0 = arith.cmpi eq, %arg1, %c0_i32 : i32
    %1 = arith.extui %0 : i1 to i32
    %c0_i32_0 = arith.constant 0 : i32
    %2 = arith.cmpi ne, %1, %c0_i32_0 : i32
    scf.if %2 {
      %cst = arith.constant 0.000000e+00 : f32
      %13 = vector.broadcast %cst : f32 to vector<16x16xf32>
      %c0 = arith.constant 0 : index
      %c0_4 = arith.constant 0 : index
      %14 = vector.load %arg11[%c0, %c0_4] : memref<16x16xf32, #tpu.memory_space<vmem>>, vector<16x16xf32>
      tpu.vector_store %arg11[%c0, %c0_4], %13 {strides = array<i32>} : memref<16x16xf32, #tpu.memory_space<vmem>>, vector<16x16xf32>,
    } else {
    }
    %c4_i32 = arith.constant 4 : i32
    %3 = arith.muli %arg0, %c4_i32 : i32
    %4 = arith.addi %3, %arg1 : i32
    %5 = arith.index_cast %4 : i32 to index
    %6 = memref.load %arg2[%5] : memref<8xi32, #tpu.memory_space<smem>>
    %c0_i32_1 = arith.constant 0 : i32
    %7 = arith.cmpi ne, %6, %c0_i32_1 : i32
    %8 = arith.extui %7 : i1 to i32
    %c0_i32_2 = arith.constant 0 : i32
    %9 = arith.cmpi ne, %8, %c0_i32_2 : i32
    scf.if %9 {
      %c0 = arith.constant 0 : index
      %c0_4 = arith.constant 0 : index
      %c0_5 = arith.constant 0 : index
      %13 = vector.load %arg4[%c0, %c0_4, %c0_5] : memref<1x16x8xbf16, #tpu.memory_space<vmem>>, vector<1x16x8xbf16>
      %14 = vector.shape_cast %13 : vector<1x16x8xbf16> to vector<16x8xbf16>
      %15 = tpu.iota {dimensions = array<i32: 0>} : vector<16x1xi32>
      %c16_i32 = arith.constant 16 : i32
      %c0_i32_6 = arith.constant 0 : i32
      %16 = arith.cmpi eq, %c16_i32, %c0_i32_6 : i32
      %c1_i32 = arith.constant 1 : i32
      %17 = arith.select %16, %c1_i32, %c16_i32 : i32
      %18 = vector.broadcast %17 : i32 to vector<16x1xi32>
      %19 = arith.remsi %15, %18 : vector<16x1xi32>
      %c0_i32_7 = arith.constant 0 : i32
      %20 = vector.broadcast %c0_i32_7 : i32 to vector<16x1xi32>
      %21 = arith.cmpi ne, %19, %20 : vector<16x1xi32>
      %c0_i32_8 = arith.constant 0 : i32
      %22 = vector.broadcast %c0_i32_8 : i32 to vector<16x1xi32>
      %23 = arith.cmpi slt, %19, %22 : vector<16x1xi32>
      %c0_i32_9 = arith.constant 0 : i32
      %24 = arith.cmpi slt, %17, %c0_i32_9 : i32
      %25 = vector.broadcast %24 : i1 to vector<16x1xi1>
      %26 = vector.broadcast %25 : vector<16x1xi1> to vector<16x1xi1>
      %27 = arith.xori %23, %26 : vector<16x1xi1>
      %28 = arith.andi %27, %21 : vector<16x1xi1>
      %29 = vector.broadcast %17 : i32 to vector<16x1xi32>
      %30 = arith.addi %19, %29 : vector<16x1xi32>
      %31 = arith.select %28, %30, %19 : vector<16x1xi1>, vector<16x1xi32>
      %c0_i32_10 = arith.constant 0 : i32
      %32 = vector.broadcast %c0_i32_10 : i32 to vector<16x1xi32>
      %33 = arith.cmpi ne, %31, %32 : vector<16x1xi32>
      %c15_i32 = arith.constant 15 : i32
      %34 = vector.broadcast %c15_i32 : i32 to vector<16x1xi32>
      %35 = arith.cmpi ne, %31, %34 : vector<16x1xi32>
      %36 = arith.extf %14 : vector<16x8xbf16> to vector<16x8xf32>
      %c1_i32_11 = arith.constant 1 : i32
      %37 = tpu.dynamic_rotate %36 by %c1_i32_11 dim 0 : vector<16x8xf32>, i32 -> vector<16x8xf32>
      %cst = arith.constant 0.000000e+00 : f32
      %38 = vector.shape_cast %33 : vector<16x1xi1> to vector<16x1xi1>
      %39 = vector.broadcast %38 : vector<16x1xi1> to vector<16x8xi1>
      %40 = vector.broadcast %cst : f32 to vector<16x8xf32>
      %41 = arith.select %39, %37, %40 : vector<16x8xi1>, vector<16x8xf32>
      %42 = arith.truncf %41 : vector<16x8xf32> to vector<16x8xbf16>
      %c15_i32_12 = arith.constant 15 : i32
      %43 = tpu.dynamic_rotate %36 by %c15_i32_12 dim 0 : vector<16x8xf32>, i32 -> vector<16x8xf32>
      %cst_13 = arith.constant 0.000000e+00 : f32
      %44 = vector.shape_cast %35 : vector<16x1xi1> to vector<16x1xi1>
      %45 = vector.broadcast %44 : vector<16x1xi1> to vector<16x8xi1>
      %46 = vector.broadcast %cst_13 : f32 to vector<16x8xf32>
      %47 = arith.select %45, %43, %46 : vector<16x8xi1>, vector<16x8xf32>
      %48 = arith.truncf %47 : vector<16x8xf32> to vector<16x8xbf16>
      %49 = arith.index_cast %arg1 : i32 to index
      %c0_14 = arith.constant 0 : index
      %c0_15 = arith.constant 0 : index
      %c0_16 = arith.constant 0 : index
      %50 = vector.load %arg5[%49, %c0_14, %c0_15, %c0_16] : memref<4x3x8x8xbf16, #tpu.memory_space<vmem>>, vector<1x3x8x8xbf16>
      %51 = vector.shape_cast %50 : vector<1x3x8x8xbf16> to vector<3x8x8xbf16>
      %52 = vector.extract_strided_slice %51 {offsets = [0, 0, 0], sizes = [1, 8, 8], strides = [1, 1, 1]} : vector<3x8x8xbf16> to vector<1x8x8xbf16>
      %53 = vector.shape_cast %52 : vector<1x8x8xbf16> to vector<8x8xbf16>
      %cst_17 = arith.constant dense<0.000000e+00> : vector<16x8xf32>
      %54 = tpu.matmul %42, %53, %cst_17 {dimension_numbers = #tpu.dot_dimension_numbers<[1], [0], [0], [1], [0, 0, 1, 1], [], []>} : vector<16x8xbf16>, vector<8x8xbf16>, vector<16x8xf32> -> vector<16x8xf32>
      %55 = vector.extract_strided_slice %51 {offsets = [1, 0, 0], sizes = [1, 8, 8], strides = [1, 1, 1]} : vector<3x8x8xbf16> to vector<1x8x8xbf16>
      %56 = vector.shape_cast %55 : vector<1x8x8xbf16> to vector<8x8xbf16>
      %cst_18 = arith.constant dense<0.000000e+00> : vector<16x8xf32>
      %57 = tpu.matmul %14, %56, %cst_18 {dimension_numbers = #tpu.dot_dimension_numbers<[1], [0], [0], [1], [0, 0, 1, 1], [], []>} : vector<16x8xbf16>, vector<8x8xbf16>, vector<16x8xf32> -> vector<16x8xf32>
      %58 = arith.addf %54, %57 : vector<16x8xf32>
      %59 = vector.extract_strided_slice %51 {offsets = [2, 0, 0], sizes = [1, 8, 8], strides = [1, 1, 1]} : vector<3x8x8xbf16> to vector<1x8x8xbf16>
      %60 = vector.shape_cast %59 : vector<1x8x8xbf16> to vector<8x8xbf16>
      %cst_19 = arith.constant dense<0.000000e+00> : vector<16x8xf32>
      %61 = tpu.matmul %48, %60, %cst_19 {dimension_numbers = #tpu.dot_dimension_numbers<[1], [0], [0], [1], [0, 0, 1, 1], [], []>} : vector<16x8xbf16>, vector<8x8xbf16>, vector<16x8xf32> -> vector<16x8xf32>
      %62 = arith.addf %58, %61 : vector<16x8xf32>
      %63 = arith.index_cast %arg1 : i32 to index
      %c0_20 = arith.constant 0 : index
      %c0_21 = arith.constant 0 : index
      %64 = vector.load %arg6[%63, %c0_20, %c0_21] : memref<4x1x8xf32, #tpu.memory_space<vmem>>, vector<1x1x8xf32>
      %65 = vector.shape_cast %64 : vector<1x1x8xf32> to vector<1x8xf32>
      %66 = vector.broadcast %65 : vector<1x8xf32> to vector<16x8xf32>
      %67 = arith.addf %62, %66 : vector<16x8xf32>
      %cst_22 = arith.constant 0.000000e+00 : f32
      %68 = vector.broadcast %cst_22 : f32 to vector<16x8xf32>
      %69 = arith.maximumf %67, %68 : vector<16x8xf32>
      %70 = arith.truncf %69 : vector<16x8xf32> to vector<16x8xbf16>
      %c1_i32_23 = arith.constant 1 : i32
      %71 = tpu.dynamic_rotate %69 by %c1_i32_23 dim 0 : vector<16x8xf32>, i32 -> vector<16x8xf32>
      %cst_24 = arith.constant 0.000000e+00 : f32
      %72 = vector.shape_cast %33 : vector<16x1xi1> to vector<16x1xi1>
      %73 = vector.broadcast %72 : vector<16x1xi1> to vector<16x8xi1>
      %74 = vector.broadcast %cst_24 : f32 to vector<16x8xf32>
      %75 = arith.select %73, %71, %74 : vector<16x8xi1>, vector<16x8xf32>
      %76 = arith.truncf %75 : vector<16x8xf32> to vector<16x8xbf16>
      %c15_i32_25 = arith.constant 15 : i32
      %77 = tpu.dynamic_rotate %69 by %c15_i32_25 dim 0 : vector<16x8xf32>, i32 -> vector<16x8xf32>
      %cst_26 = arith.constant 0.000000e+00 : f32
      %78 = vector.shape_cast %35 : vector<16x1xi1> to vector<16x1xi1>
      %79 = vector.broadcast %78 : vector<16x1xi1> to vector<16x8xi1>
      %80 = vector.broadcast %cst_26 : f32 to vector<16x8xf32>
      %81 = arith.select %79, %77, %80 : vector<16x8xi1>, vector<16x8xf32>
      %82 = arith.truncf %81 : vector<16x8xf32> to vector<16x8xbf16>
      %83 = arith.index_cast %arg1 : i32 to index
      %c0_27 = arith.constant 0 : index
      %c0_28 = arith.constant 0 : index
      %c0_29 = arith.constant 0 : index
      %84 = vector.load %arg7[%83, %c0_27, %c0_28, %c0_29] : memref<4x3x8x16xbf16, #tpu.memory_space<vmem>>, vector<1x3x8x16xbf16>
      %85 = vector.shape_cast %84 : vector<1x3x8x16xbf16> to vector<3x8x16xbf16>
      %86 = vector.extract_strided_slice %85 {offsets = [0, 0, 0], sizes = [1, 8, 16], strides = [1, 1, 1]} : vector<3x8x16xbf16> to vector<1x8x16xbf16>
      %87 = vector.shape_cast %86 : vector<1x8x16xbf16> to vector<8x16xbf16>
      %cst_30 = arith.constant dense<0.000000e+00> : vector<16x16xf32>
      %88 = tpu.matmul %76, %87, %cst_30 {dimension_numbers = #tpu.dot_dimension_numbers<[1], [0], [0], [1], [0, 0, 1, 1], [], []>} : vector<16x8xbf16>, vector<8x16xbf16>, vector<16x16xf32> -> vector<16x16xf32>
      %89 = vector.extract_strided_slice %85 {offsets = [1, 0, 0], sizes = [1, 8, 16], strides = [1, 1, 1]} : vector<3x8x16xbf16> to vector<1x8x16xbf16>
      %90 = vector.shape_cast %89 : vector<1x8x16xbf16> to vector<8x16xbf16>
      %cst_31 = arith.constant dense<0.000000e+00> : vector<16x16xf32>
      %91 = tpu.matmul %70, %90, %cst_31 {dimension_numbers = #tpu.dot_dimension_numbers<[1], [0], [0], [1], [0, 0, 1, 1], [], []>} : vector<16x8xbf16>, vector<8x16xbf16>, vector<16x16xf32> -> vector<16x16xf32>
      %92 = arith.addf %88, %91 : vector<16x16xf32>
      %93 = vector.extract_strided_slice %85 {offsets = [2, 0, 0], sizes = [1, 8, 16], strides = [1, 1, 1]} : vector<3x8x16xbf16> to vector<1x8x16xbf16>
      %94 = vector.shape_cast %93 : vector<1x8x16xbf16> to vector<8x16xbf16>
      %cst_32 = arith.constant dense<0.000000e+00> : vector<16x16xf32>
      %95 = tpu.matmul %82, %94, %cst_32 {dimension_numbers = #tpu.dot_dimension_numbers<[1], [0], [0], [1], [0, 0, 1, 1], [], []>} : vector<16x8xbf16>, vector<8x16xbf16>, vector<16x16xf32> -> vector<16x16xf32>
      %96 = arith.addf %92, %95 : vector<16x16xf32>
      %97 = arith.index_cast %arg1 : i32 to index
      %c0_33 = arith.constant 0 : index
      %c0_34 = arith.constant 0 : index
      %98 = vector.load %arg9[%97, %c0_33, %c0_34] : memref<4x8x16xbf16, #tpu.memory_space<vmem>>, vector<1x8x16xbf16>
      %99 = vector.shape_cast %98 : vector<1x8x16xbf16> to vector<8x16xbf16>
      %cst_35 = arith.constant dense<0.000000e+00> : vector<16x16xf32>
      %100 = tpu.matmul %14, %99, %cst_35 {dimension_numbers = #tpu.dot_dimension_numbers<[1], [0], [0], [1], [0, 0, 1, 1], [], []>} : vector<16x8xbf16>, vector<8x16xbf16>, vector<16x16xf32> -> vector<16x16xf32>
      %101 = arith.addf %96, %100 : vector<16x16xf32>
      %102 = arith.index_cast %arg1 : i32 to index
      %c0_36 = arith.constant 0 : index
      %c0_37 = arith.constant 0 : index
      %103 = vector.load %arg8[%102, %c0_36, %c0_37] : memref<4x1x16xf32, #tpu.memory_space<vmem>>, vector<1x1x16xf32>
      %104 = vector.shape_cast %103 : vector<1x1x16xf32> to vector<1x16xf32>
      %105 = vector.broadcast %104 : vector<1x16xf32> to vector<16x16xf32>
      %106 = arith.addf %101, %105 : vector<16x16xf32>
      %cst_38 = arith.constant 0.000000e+00 : f32
      %107 = vector.broadcast %cst_38 : f32 to vector<16x16xf32>
      %108 = arith.maximumf %106, %107 : vector<16x16xf32>
      %c0_39 = arith.constant 0 : index
      %c0_40 = arith.constant 0 : index
      %109 = vector.load %arg11[%c0_39, %c0_40] : memref<16x16xf32, #tpu.memory_space<vmem>>, vector<16x16xf32>
      %c0_41 = arith.constant 0 : index
      %c0_42 = arith.constant 0 : index
      %c0_43 = arith.constant 0 : index
      %c0_44 = arith.constant 0 : index
      %110 = vector.load %arg3[%c0_41, %c0_42, %c0_43, %c0_44] : memref<1x1x16x1xf32, #tpu.memory_space<vmem>>, vector<1x1x16x1xf32>
      %111 = vector.shape_cast %110 : vector<1x1x16x1xf32> to vector<16x1xf32>
      %112 = vector.broadcast %111 : vector<16x1xf32> to vector<16x16xf32>
      %113 = arith.mulf %112, %108 : vector<16x16xf32>
      %114 = arith.addf %109, %113 : vector<16x16xf32>
      %c0_45 = arith.constant 0 : index
      %c0_46 = arith.constant 0 : index
      %115 = vector.load %arg11[%c0_45, %c0_46] : memref<16x16xf32, #tpu.memory_space<vmem>>, vector<16x16xf32>
      tpu.vector_store %arg11[%c0_45, %c0_46], %114 {strides = array<i32>} : memref<16x16xf32, #tpu.memory_space<vmem>>, vector<16x16xf32>,
    } else {
    }
    %c3_i32 = arith.constant 3 : i32
    %10 = arith.cmpi eq, %arg1, %c3_i32 : i32
    %11 = arith.extui %10 : i1 to i32
    %c0_i32_3 = arith.constant 0 : i32
    %12 = arith.cmpi ne, %11, %c0_i32_3 : i32
    scf.if %12 {
      %c0 = arith.constant 0 : index
      %c0_4 = arith.constant 0 : index
      %13 = vector.load %arg11[%c0, %c0_4] : memref<16x16xf32, #tpu.memory_space<vmem>>, vector<16x16xf32>
      %c0_5 = arith.constant 0 : index
      %c0_6 = arith.constant 0 : index
      %c0_7 = arith.constant 0 : index
      %14 = vector.load %arg10[%c0_5, %c0_6, %c0_7] : memref<1x16x16xf32, #tpu.memory_space<vmem>>, vector<1x16x16xf32>
      %15 = vector.shape_cast %14 : vector<1x16x16xf32> to vector<16x16xf32>
      %16 = vector.shape_cast %13 : vector<16x16xf32> to vector<1x16x16xf32>
      tpu.vector_store %arg10[%c0_5, %c0_6, %c0_7], %16 {strides = array<i32>} : memref<1x16x16xf32, #tpu.memory_space<vmem>>, vector<1x16x16xf32>,
    } else {
    }
    return
  }
  func.func @transform_0(%arg0: i32, %arg1: i32) -> i32 {
    %c0_i32 = arith.constant 0 : i32
    %c0_i32_0 = arith.constant 0 : i32
    return %c0_i32 : i32
  }
  func.func @transform_1(%arg0: i32, %arg1: i32) -> (i32, i32, i32, i32) {
    %c0_i32 = arith.constant 0 : i32
    %c0_i32_0 = arith.constant 0 : i32
    %c0_i32_1 = arith.constant 0 : i32
    return %arg1, %arg0, %c0_i32, %c0_i32_0 : i32, i32, i32, i32
  }
  func.func @transform_2(%arg0: i32, %arg1: i32) -> (i32, i32, i32) {
    %c0_i32 = arith.constant 0 : i32
    %c0_i32_0 = arith.constant 0 : i32
    %c0_i32_1 = arith.constant 0 : i32
    return %arg0, %c0_i32, %c0_i32_0 : i32, i32, i32
  }
  func.func @transform_3(%arg0: i32, %arg1: i32) -> (i32, i32, i32, i32) {
    %c0_i32 = arith.constant 0 : i32
    %c0_i32_0 = arith.constant 0 : i32
    %c0_i32_1 = arith.constant 0 : i32
    %c0_i32_2 = arith.constant 0 : i32
    %c0_i32_3 = arith.constant 0 : i32
    return %c0_i32, %c0_i32_0, %c0_i32_1, %c0_i32_2 : i32, i32, i32, i32
  }
  func.func @transform_4(%arg0: i32, %arg1: i32) -> (i32, i32, i32) {
    %c0_i32 = arith.constant 0 : i32
    %c0_i32_0 = arith.constant 0 : i32
    %c0_i32_1 = arith.constant 0 : i32
    %c0_i32_2 = arith.constant 0 : i32
    return %c0_i32, %c0_i32_0, %c0_i32_1 : i32, i32, i32
  }
  func.func @transform_5(%arg0: i32, %arg1: i32) -> (i32, i32, i32, i32) {
    %c0_i32 = arith.constant 0 : i32
    %c0_i32_0 = arith.constant 0 : i32
    %c0_i32_1 = arith.constant 0 : i32
    %c0_i32_2 = arith.constant 0 : i32
    %c0_i32_3 = arith.constant 0 : i32
    return %c0_i32, %c0_i32_0, %c0_i32_1, %c0_i32_2 : i32, i32, i32, i32
  }
  func.func @transform_6(%arg0: i32, %arg1: i32) -> (i32, i32, i32) {
    %c0_i32 = arith.constant 0 : i32
    %c0_i32_0 = arith.constant 0 : i32
    %c0_i32_1 = arith.constant 0 : i32
    %c0_i32_2 = arith.constant 0 : i32
    return %c0_i32, %c0_i32_0, %c0_i32_1 : i32, i32, i32
  }
  func.func @transform_7(%arg0: i32, %arg1: i32) -> (i32, i32, i32) {
    %c0_i32 = arith.constant 0 : i32
    %c0_i32_0 = arith.constant 0 : i32
    %c0_i32_1 = arith.constant 0 : i32
    %c0_i32_2 = arith.constant 0 : i32
    return %c0_i32, %c0_i32_0, %c0_i32_1 : i32, i32, i32
  }
  func.func @transform_8(%arg0: i32, %arg1: i32) -> (i32, i32, i32) {
    %c0_i32 = arith.constant 0 : i32
    %c0_i32_0 = arith.constant 0 : i32
    %c0_i32_1 = arith.constant 0 : i32
    return %arg0, %c0_i32, %c0_i32_0 : i32, i32, i32
  }
}

</mosaic_0001>

<llo_original>
// kernel: tpu_custom_call.1
$region0: #{tpu_custom_call.1}
  #allocation0 [shape = 'u32[]', space=smem, size = 0x4, offset = 0x4, fixed_abs, tag = 'smem constant byte address 0x4 - core index']
  #allocation1 [shape = 'u32[144,128]{1,0:T(1,128)}', space=vmem, size = 0x12000, scoped, tag = 'internal scratch']
  #allocation2 [shape = 'f32[16,16]{1,0:T(8,128)}', space=vmem, size = 0x2000, scoped, tag = 'scratch operand']
  %s0 = inlined_call_operand.vmem [shape: s32[8], index: 0, kind: input, shape index: {}]
  %s1 = inlined_call_operand.vmem [shape: f32[4,2,16,1], index: 1, kind: input, shape index: {}]
  %s2 = inlined_call_operand.vmem [shape: bf16[2,16,8], index: 2, kind: input, shape index: {}]
  %s3 = inlined_call_operand.vmem [shape: bf16[4,3,8,8], index: 3, kind: input, shape index: {}]
  %s4 = inlined_call_operand.vmem [shape: f32[4,1,8], index: 4, kind: input, shape index: {}]
  %s5 = inlined_call_operand.vmem [shape: bf16[4,3,8,16], index: 5, kind: input, shape index: {}]
  %s6 = inlined_call_operand.vmem [shape: f32[4,1,16], index: 6, kind: input, shape index: {}]
  %s7 = inlined_call_operand.vmem [shape: bf16[4,8,16], index: 7, kind: input, shape index: {}]
  %s8 = inlined_call_operand.hbm [shape: f32[2,16,16], index: 8, kind: output, shape index: {}]
  %s9 = sld [smem:[#allocation0]]
  $region81: #{tpu_custom_call.1} parent=0
    _
  %s11 = ssub.s32 1, %s9
  %s12 = scalar_select 0, %s11, %s9
  $region1: #{tpu_custom_call.1} parent=0
    #allocation3 [shape = 'u8[512]{0}', space=smem, size = 0x200, scoped, tag = 'input window, operand 0, single buffered']
    #allocation4 [shape = 's32[2]{0}', space=sflag, size = 0x8, scoped, tag = 'scoped memory for tpu_custom_call.1']
    #allocation5 [shape = 's32[2]{0}', space=sflag, size = 0x8, scoped, tag = 'scoped memory for tpu_custom_call.1']
    #allocation6 [shape = 'u8[16384]{0}', space=vmem, size = 0x4000, scoped, tag = 'output window, operand 0']
    %13 = vsyncpa [#allocation5], 0
    %14 = vsyncpa [#allocation4], 0
    %s15 = scalar_lea.sflag [#allocation4], 1
    %16 = vsyncpa %s15, 0
    loop: start=0, step=1, limit=10
    $region2: #{tpu_custom_call.1} parent=1 // loop_pre_header
      _
    $region3: #{tpu_custom_call.1} parent=1 // loop_header
      %s18 = sphi 0, %s22
      %p19 = scmp.ge.s32.totalorder %s18, 10
      %s25 = sphi 0, %s37
      %s26 = sphi 0, %s33
      %s27 = sphi 0, %s25
      %s28 = sphi 0, %s26
      %s29 = sphi 0, %s27
      %s30 = sphi 0, %s28
      %s38 = sphi 0, %s38
      %s40 = sphi 0, %s38
      %s41 = sphi 0, %s40
      %s55 = sphi 0, %s41
      %s63 = sphi 0, %s65
      %s66 = sphi 0, %s63
      %s67 = sphi 0, %s66
      %s83 = sphi 0, %s67
      %s89 = sphi 0, %s91
      %s92 = sphi 0, %s89
      %s93 = sphi 0, %s92
      %s109 = sphi 0, %s93
      %s113 = sphi 0, %s113
      %s115 = sphi 0, %s113
      %s116 = sphi 0, %s115
      %s130 = sphi 0, %s116
      %s134 = sphi 0, %s134
      %s136 = sphi 0, %s134
      %s137 = sphi 0, %s136
      %s151 = sphi 0, %s137
      %s155 = sphi 0, %s155
      %s157 = sphi 0, %s155
      %s158 = sphi 0, %s157
      %s172 = sphi 0, %s158
      %s176 = sphi 0, %s176
      %s178 = sphi 0, %s176
      %s179 = sphi 0, %s178
      %s193 = sphi 0, %s179
      %s197 = sphi 0, %s197
      %s199 = sphi 0, %s197
      %s200 = sphi 0, %s199
      %s214 = sphi 0, %s200
      %s220 = sphi 0, %s222
      %s223 = sphi 0, %s220
      %s224 = sphi 0, %s223
      %s240 = sphi 0, %s224
    $region4: #{tpu_custom_call.1} parent=1 // loop_header_branch
      %21 = sbr.rel (%p19) target = $region8
    $region5: #{tpu_custom_call.1} parent=1 // loop_body
      %s23 = ssub.s32 %s18, 1
      %s24 = ssub.s32 %s18, 2
      %s31 = sadd.s32 1, %s26
      %p32 = scmp.ge.s32.totalorder %s31, 4
      %s33 = scalar_select %p32, 0, %s31
      %s34 = sadd.s32 1, %s25
      %s35 = scalar_select %p32, %s34, %s25
      %p36 = scmp.ge.s32.totalorder %s35, 2
      %s37 = scalar_select %p36, 0, %s35
      %s39 = sadd.s32 %s38, 1
      %p42 = scmp.eq.s32.totalorder %s18, 7
      %p43 = scmp.ne.s32.totalorder %s38, %s40
      %p44 = scmp.eq.s32.totalorder %s18, 0
      %p45 = por %p43, %p44
      %p46 = scmp.ne.s32.totalorder %s38, %s40
      %p47 = scmp.eq.s32.totalorder %s23, 7
      %p48 = por %p46, %p47
      %p49 = scmp.ne.s32.totalorder %s40, %s41
      %p50 = scmp.eq.s32.totalorder %s23, 0
      %p51 = por %p49, %p50
      %p52 = scmp.ne.s32.totalorder %s40, %s41
      %p53 = scmp.eq.s32.totalorder %s24, 7
      %p54 = por %p52, %p53
      %p56 = scmp.ne.s32.totalorder %s41, %s55
      %p57 = scmp.eq.s32.totalorder %s24, 0
      %p58 = por %p56, %p57
      %s59 = ssub.s32 %s26, %s33
      %s60 = ssub.s32 %s25, %s37
      %s61 = sor.u32 %s59, %s60
      %p62 = scmp.eq.s32.totalorder %s61, 0
      %s64 = sadd.s32 %s63, 1
      %s65 = scalar_select %p62, %s63, %s64
      %p68 = pneg %p62
      %p69 = scmp.eq.s32.totalorder %s18, 7
      %p70 = por %p68, %p69
      %p71 = scmp.ne.s32.totalorder %s63, %s66
      %p72 = scmp.eq.s32.totalorder %s18, 0
      %p73 = por %p71, %p72
      %p74 = scmp.ne.s32.totalorder %s63, %s66
      %p75 = scmp.eq.s32.totalorder %s23, 7
      %p76 = por %p74, %p75
      %p77 = scmp.ne.s32.totalorder %s66, %s67
      %p78 = scmp.eq.s32.totalorder %s23, 0
      %p79 = por %p77, %p78
      %p80 = scmp.ne.s32.totalorder %s66, %s67
      %p81 = scmp.eq.s32.totalorder %s24, 7
      %p82 = por %p80, %p81
      %p84 = scmp.ne.s32.totalorder %s67, %s83
      %p85 = scmp.eq.s32.totalorder %s24, 0
      %p86 = por %p84, %p85
      %s87 = ssub.s32 %s25, %s37
      %p88 = scmp.eq.s32.totalorder %s87, 0
      %s90 = sadd.s32 %s89, 1
      %s91 = scalar_select %p88, %s89, %s90
      %p94 = pneg %p88
      %p95 = scmp.eq.s32.totalorder %s18, 7
      %p96 = por %p94, %p95
      %p97 = scmp.ne.s32.totalorder %s89, %s92
      %p98 = scmp.eq.s32.totalorder %s18, 0
      %p99 = por %p97, %p98
      %p100 = scmp.ne.s32.totalorder %s89, %s92
      %p101 = scmp.eq.s32.totalorder %s23, 7
      %p102 = por %p100, %p101
      %p103 = scmp.ne.s32.totalorder %s92, %s93
      %p104 = scmp.eq.s32.totalorder %s23, 0
      %p105 = por %p103, %p104
      %p106 = scmp.ne.s32.totalorder %s92, %s93
      %p107 = scmp.eq.s32.totalorder %s24, 7
      %p108 = por %p106, %p107
      %p110 = scmp.ne.s32.totalorder %s93, %s109
      %p111 = scmp.eq.s32.totalorder %s24, 0
      %p112 = por %p110, %p111
      %s114 = sadd.s32 %s113, 1
      %p117 = scmp.eq.s32.totalorder %s18, 7
      %p118 = scmp.ne.s32.totalorder %s113, %s115
      %p119 = scmp.eq.s32.totalorder %s18, 0
      %p120 = por %p118, %p119
      %p121 = scmp.ne.s32.totalorder %s113, %s115
      %p122 = scmp.eq.s32.totalorder %s23, 7
      %p123 = por %p121, %p122
      %p124 = scmp.ne.s32.totalorder %s115, %s116
      %p125 = scmp.eq.s32.totalorder %s23, 0
      %p126 = por %p124, %p125
      %p127 = scmp.ne.s32.totalorder %s115, %s116
      %p128 = scmp.eq.s32.totalorder %s24, 7
      %p129 = por %p127, %p128
      %p131 = scmp.ne.s32.totalorder %s116, %s130
      %p132 = scmp.eq.s32.totalorder %s24, 0
      %p133 = por %p131, %p132
      %s135 = sadd.s32 %s134, 1
      %p138 = scmp.eq.s32.totalorder %s18, 7
      %p139 = scmp.ne.s32.totalorder %s134, %s136
      %p140 = scmp.eq.s32.totalorder %s18, 0
      %p141 = por %p139, %p140
      %p142 = scmp.ne.s32.totalorder %s134, %s136
      %p143 = scmp.eq.s32.totalorder %s23, 7
      %p144 = por %p142, %p143
      %p145 = scmp.ne.s32.totalorder %s136, %s137
      %p146 = scmp.eq.s32.totalorder %s23, 0
      %p147 = por %p145, %p146
      %p148 = scmp.ne.s32.totalorder %s136, %s137
      %p149 = scmp.eq.s32.totalorder %s24, 7
      %p150 = por %p148, %p149
      %p152 = scmp.ne.s32.totalorder %s137, %s151
      %p153 = scmp.eq.s32.totalorder %s24, 0
      %p154 = por %p152, %p153
      %s156 = sadd.s32 %s155, 1
      %p159 = scmp.eq.s32.totalorder %s18, 7
      %p160 = scmp.ne.s32.totalorder %s155, %s157
      %p161 = scmp.eq.s32.totalorder %s18, 0
      %p162 = por %p160, %p161
      %p163 = scmp.ne.s32.totalorder %s155, %s157
      %p164 = scmp.eq.s32.totalorder %s23, 7
      %p165 = por %p163, %p164
      %p166 = scmp.ne.s32.totalorder %s157, %s158
      %p167 = scmp.eq.s32.totalorder %s23, 0
      %p168 = por %p166, %p167
      %p169 = scmp.ne.s32.totalorder %s157, %s158
      %p170 = scmp.eq.s32.totalorder %s24, 7
      %p171 = por %p169, %p170
      %p173 = scmp.ne.s32.totalorder %s158, %s172
      %p174 = scmp.eq.s32.totalorder %s24, 0
      %p175 = por %p173, %p174
      %s177 = sadd.s32 %s176, 1
      %p180 = scmp.eq.s32.totalorder %s18, 7
      %p181 = scmp.ne.s32.totalorder %s176, %s178
      %p182 = scmp.eq.s32.totalorder %s18, 0
      %p183 = por %p181, %p182
      %p184 = scmp.ne.s32.totalorder %s176, %s178
      %p185 = scmp.eq.s32.totalorder %s23, 7
      %p186 = por %p184, %p185
      %p187 = scmp.ne.s32.totalorder %s178, %s179
      %p188 = scmp.eq.s32.totalorder %s23, 0
      %p189 = por %p187, %p188
      %p190 = scmp.ne.s32.totalorder %s178, %s179
      %p191 = scmp.eq.s32.totalorder %s24, 7
      %p192 = por %p190, %p191
      %p194 = scmp.ne.s32.totalorder %s179, %s193
      %p195 = scmp.eq.s32.totalorder %s24, 0
      %p196 = por %p194, %p195
      %s198 = sadd.s32 %s197, 1
      %p201 = scmp.eq.s32.totalorder %s18, 7
      %p202 = scmp.ne.s32.totalorder %s197, %s199
      %p203 = scmp.eq.s32.totalorder %s18, 0
      %p204 = por %p202, %p203
      %p205 = scmp.ne.s32.totalorder %s197, %s199
      %p206 = scmp.eq.s32.totalorder %s23, 7
      %p207 = por %p205, %p206
      %p208 = scmp.ne.s32.totalorder %s199, %s200
      %p209 = scmp.eq.s32.totalorder %s23, 0
      %p210 = por %p208, %p209
      %p211 = scmp.ne.s32.totalorder %s199, %s200
      %p212 = scmp.eq.s32.totalorder %s24, 7
      %p213 = por %p211, %p212
      %p215 = scmp.ne.s32.totalorder %s200, %s214
      %p216 = scmp.eq.s32.totalorder %s24, 0
      %p217 = por %p215, %p216
      %s218 = ssub.s32 %s25, %s37
      %p219 = scmp.eq.s32.totalorder %s218, 0
      %s221 = sadd.s32 %s220, 1
      %s222 = scalar_select %p219, %s220, %s221
      %p225 = pneg %p219
      %p226 = scmp.eq.s32.totalorder %s18, 7
      %p227 = por %p225, %p226
      %p228 = scmp.ne.s32.totalorder %s220, %s223
      %p229 = scmp.eq.s32.totalorder %s18, 0
      %p230 = por %p228, %p229
      %p231 = scmp.ne.s32.totalorder %s220, %s223
      %p232 = scmp.eq.s32.totalorder %s23, 7
      %p233 = por %p231, %p232
      %p234 = scmp.ne.s32.totalorder %s223, %s224
      %p235 = scmp.eq.s32.totalorder %s23, 0
      %p236 = por %p234, %p235
      %p237 = scmp.ne.s32.totalorder %s223, %s224
      %p238 = scmp.eq.s32.totalorder %s24, 7
      %p239 = por %p237, %p238
      %p241 = scmp.ne.s32.totalorder %s224, %s240
      %p242 = scmp.eq.s32.totalorder %s24, 0
      %p243 = por %p241, %p242
      %p244 = scmp.le.s32.totalorder 1, %s18
      %p245 = scmp.lt.s32.totalorder %s18, 9
      %p246 = pnand %p244, %p245
      %p247 = pneg %p246
      // Predicated region
      $region9: #{tpu_custom_call.1} parent=5 // pred_check
        _
      $region10: #{tpu_custom_call.1} parent=5 // pred_check_branch
        %249 = sbr.rel (%p246) target = $region12
      $region11: #{tpu_custom_call.1} parent=5 // pred_region
        %s250 = ssub.s32 %s18, 1
        // Predicated region
        $region13: #{tpu_custom_call.1} parent=11 // pred_check
          %p251 = pneg %p51
        $region14: #{tpu_custom_call.1} parent=11 // pred_check_branch
          %253 = sbr.rel (%p251) target = $region16
        $region15: #{tpu_custom_call.1} parent=11 // pred_region
          %s255 = ssub.s32 16, 16
          %256 = vsyncadd [#allocation5], %s255
          %s258 = sshll.u32 %s0, 4
          %s259 = int_to_ptr.vmem [resolvable:$true] %s258
          %261 = dma.vmem_to_smem %s259, 16, [#allocation3], [#allocation5]
        $region16: #{tpu_custom_call.1} parent=11 // pred_fallthru
          _
        // Predicated region
        $region17: #{tpu_custom_call.1} parent=11 // pred_check
          %p262 = pneg %p126
        $region18: #{tpu_custom_call.1} parent=11 // pred_check_branch
          %264 = sbr.rel (%p262) target = $region20
        $region19: #{tpu_custom_call.1} parent=11 // pred_region
          _
        $region20: #{tpu_custom_call.1} parent=11 // pred_fallthru
          _
        // Predicated region
        $region21: #{tpu_custom_call.1} parent=11 // pred_check
          %p265 = pneg %p147
        $region22: #{tpu_custom_call.1} parent=11 // pred_check_branch
          %267 = sbr.rel (%p265) target = $region24
        $region23: #{tpu_custom_call.1} parent=11 // pred_region
          _
        $region24: #{tpu_custom_call.1} parent=11 // pred_fallthru
          _
        // Predicated region
        $region25: #{tpu_custom_call.1} parent=11 // pred_check
          %p268 = pneg %p168
        $region26: #{tpu_custom_call.1} parent=11 // pred_check_branch
          %270 = sbr.rel (%p268) target = $region28
        $region27: #{tpu_custom_call.1} parent=11 // pred_region
          _
        $region28: #{tpu_custom_call.1} parent=11 // pred_fallthru
          _
        // Predicated region
        $region29: #{tpu_custom_call.1} parent=11 // pred_check
          %p271 = pneg %p189
        $region30: #{tpu_custom_call.1} parent=11 // pred_check_branch
          %273 = sbr.rel (%p271) target = $region32
        $region31: #{tpu_custom_call.1} parent=11 // pred_region
          _
        $region32: #{tpu_custom_call.1} parent=11 // pred_fallthru
          _
        // Predicated region
        $region33: #{tpu_custom_call.1} parent=11 // pred_check
          %p274 = pneg %p210
        $region34: #{tpu_custom_call.1} parent=11 // pred_check_branch
          %276 = sbr.rel (%p274) target = $region36
        $region35: #{tpu_custom_call.1} parent=11 // pred_region
          _
        $region36: #{tpu_custom_call.1} parent=11 // pred_fallthru
          _
      $region12: #{tpu_custom_call.1} parent=5 // pred_fallthru
        _
      %p277 = scmp.lt.s32.totalorder %s18, 8
      // Predicated region
      $region37: #{tpu_custom_call.1} parent=5 // pred_check
        %p278 = pneg %p277
      $region38: #{tpu_custom_call.1} parent=5 // pred_check_branch
        %280 = sbr.rel (%p278) target = $region40
      $region39: #{tpu_custom_call.1} parent=5 // pred_region
        // Predicated region
        $region41: #{tpu_custom_call.1} parent=39 // pred_check
          %p281 = pneg %p73
        $region42: #{tpu_custom_call.1} parent=39 // pred_check_branch
          %283 = sbr.rel (%p281) target = $region44
        $region43: #{tpu_custom_call.1} parent=39 // pred_region
          %p284 = scmp.lt.s32.totalorder %s26, 3
          %s285 = scalar_select %p284, %s26, 3
          %p286 = scmp.lt.s32.totalorder %s25, 1
          %s287 = scalar_select %p286, %s25, 1
          %s288 = smul.addr %s287, 2
          %s289 = smul.addr %s285, 4
          %s290 = sadd.s32 %s288, %s289
          %s291 = smul.addr %s290, 8
          %s292 = scalar_lea.vmem %s1, %s291
        $region44: #{tpu_custom_call.1} parent=39 // pred_fallthru
          _
        // Predicated region
        $region45: #{tpu_custom_call.1} parent=39 // pred_check
          %p293 = pneg %p99
        $region46: #{tpu_custom_call.1} parent=39 // pred_check_branch
          %295 = sbr.rel (%p293) target = $region48
        $region47: #{tpu_custom_call.1} parent=39 // pred_region
          %p296 = scmp.lt.s32.totalorder %s25, 1
          %s297 = scalar_select %p296, %s25, 1
          %s298 = smul.addr %s297, 2
          %s299 = smul.addr %s298, 4
          %s300 = scalar_lea.vmem %s2, %s299
        $region48: #{tpu_custom_call.1} parent=39 // pred_fallthru
          _
      $region40: #{tpu_custom_call.1} parent=5 // pred_fallthru
        _
      %p301 = scmp.le.s32.totalorder 1, %s18
      %p302 = scmp.lt.s32.totalorder %s18, 9
      %p303 = pnand %p301, %p302
      %p304 = pneg %p303
      // Predicated region
      $region49: #{tpu_custom_call.1} parent=5 // pred_check
        _
      $region50: #{tpu_custom_call.1} parent=5 // pred_check_branch
        %306 = sbr.rel (%p303) target = $region52
      $region51: #{tpu_custom_call.1} parent=5 // pred_region
        %s307 = ssub.s32 %s18, 1
        // Predicated region
        $region53: #{tpu_custom_call.1} parent=51 // pred_check
          %p308 = pneg %p51
        $region54: #{tpu_custom_call.1} parent=51 // pred_check_branch
          %310 = sbr.rel (%p308) target = $region56
        $region55: #{tpu_custom_call.1} parent=51 // pred_region
          %311 = dma.done [#allocation5], 16
        $region56: #{tpu_custom_call.1} parent=51 // pred_fallthru
          _
        %312 = sfence
        %p313 = pneg %p51
        %p314 = pneg %p48
        %p315 = scmp.lt.s32.totalorder %s28, 3
        %s316 = scalar_select %p315, %s28, 3
        %p317 = scmp.lt.s32.totalorder %s27, 1
        %s318 = scalar_select %p317, %s27, 1
        %s319 = smul.addr %s318, 2
        %s320 = smul.addr %s316, 4
        %s321 = sadd.s32 %s319, %s320
        %s322 = smul.addr %s321, 8
        %s323 = scalar_lea.vmem %s1, %s322
        %p324 = pneg %p79
        %p325 = pneg %p76
        %p326 = scmp.lt.s32.totalorder %s27, 1
        %s327 = scalar_select %p326, %s27, 1
        %s328 = smul.addr %s327, 2
        %s329 = smul.addr %s328, 4
        %s330 = scalar_lea.vmem %s2, %s329
        %p331 = pneg %p105
        %p332 = pneg %p102
        %p333 = pneg %p126
        %p334 = pneg %p123
        %p335 = pneg %p147
        %p336 = pneg %p144
        %p337 = pneg %p168
        %p338 = pneg %p165
        %p339 = pneg %p189
        %p340 = pneg %p186
        %p341 = pneg %p210
        %p342 = pneg %p207
        %p343 = pneg %p236
        %p344 = pneg %p233
        %s345 = sand.u32 %s223, 1
        %s346 = scalar_lea.sflag [#allocation4], %s345
        %s347 = sand.u32 %s223, 1
        %s348 = smul.addr %s347, 16
        %s349 = scalar_lea.vmem [#allocation6], %s348
        %p350 = scmp.lt.s32.totalorder %s28, 3
        %s351 = scalar_select %p350, %s28, 3
        %p352 = scmp.lt.s32.totalorder %s27, 1
        %s353 = scalar_select %p352, %s27, 1
        %s354 = smul.addr %s353, 2
        %s355 = smul.addr %s351, 4
        %s356 = sadd.s32 %s354, %s355
        %s357 = smul.addr %s356, 8
        %s358 = scalar_lea.vmem %s1, %s357
        %p359 = scmp.lt.s32.totalorder %s27, 1
        %s360 = scalar_select %p359, %s27, 1
        %s361 = smul.addr %s360, 2
        %s362 = smul.addr %s361, 4
        %s363 = scalar_lea.vmem %s2, %s362
        %p365 = scmp.eq.s32.totalorder %s28, 0
        // Predicated region
        $region57: #{tpu_custom_call.1} parent=51 // pred_check
          %p366 = pneg %p365
        $region58: #{tpu_custom_call.1} parent=51 // pred_check_branch
          %368 = sbr.rel (%p366) target = $region60
        $region59: #{tpu_custom_call.1} parent=51 // pred_region
          %vm369 = vcmask 130048
          %370 = vst.msk [vmem:[#allocation2] sm:$0xff] %vm369, 0.0
          %371 = vst.msk [vmem:[#allocation2 + $0x8] sm:$0xff] %vm369, 0.0
        $region60: #{tpu_custom_call.1} parent=51 // pred_fallthru
          _
        %s372 = smul.u32 %s27, 4
        %s373 = sadd.s32 %s372, %s28
        %s374 = sld [smem:[#allocation3 + %s373]]
        %p375 = scmp.ne.s32.totalorder %s374, 0
        // Predicated region
        $region61: #{tpu_custom_call.1} parent=51 // pred_check
          %p376 = pneg %p375
        $region62: #{tpu_custom_call.1} parent=51 // pred_check_branch
          %378 = sbr.rel (%p376) target = $region64
        $region63: #{tpu_custom_call.1} parent=51 // pred_region
          %v379 = vld [vmem:[%s363] sm:$0xf]
          %v380 = vld [vmem:[%s363 + $0x4] sm:$0xf]
          %v381 = vlaneseq
          %v382 = vshrl.u32 %v381, 7
          %v383 = vadd.s32 %v382, 8
          %vm384 = vcmp.lt.s32.totalorder %v382, 0
          %v385 = vsub.s32 0, %v382
          %v386 = vsel %vm384, %v385, %v382
          %v387 = vshrl.u32 %v386, 4
          %v388 = vand.u32 %v386, 15
          %v389 = vsub.s32 0, %v388
          %v390 = vsel %vm384, %v389, %v388
          %vm391 = vcmp.lt.s32.totalorder %v383, 0
          %v392 = vsub.s32 0, %v383
          %v393 = vsel %vm391, %v392, %v383
          %v394 = vshrl.u32 %v393, 4
          %v395 = vand.u32 %v393, 15
          %v396 = vsub.s32 0, %v395
          %v397 = vsel %vm391, %v396, %v395
          %vm398 = vcmp.ne.s32.totalorder %v390, 0
          %vm399 = vcmp.ne.s32.totalorder %v397, 0
          %vm400 = vcmp.lt.s32.totalorder %v390, 0
          %vm401 = vcmp.lt.s32.totalorder %v397, 0
          %vm402 = vmand %vm400, %vm398
          %vm403 = vmand %vm401, %vm399
          %v404 = vadd.s32 %v390, 16
          %v405 = vadd.s32 %v397, 16
          %v406 = vsel %vm402, %v404, %v390
          %v407 = vsel %vm403, %v405, %v397
          %vm408 = vcmp.ne.s32.totalorder %v406, 0
          %vm409 = vcmp.ne.s32.totalorder %v407, 0
          %vm410 = vcmp.ne.s32.totalorder %v406, 15
          %vm411 = vcmp.ne.s32.totalorder %v407, 15
          %v412 = vunpack.c.l.bf16 %v379
          %v413 = vunpack.c.l.bf16 %v380
          %v414 = vrot.slane %v412, 7
          %v415 = vrot.slane %v413, 7
          %vm416 = vcmp.lt.s32.totalorder %v382, 1
          %v417 = vsel %vm416, %v414, %v415
          %v418 = vsel %vm416, %v415, %v414
          %v419 = vsel %vm408, 1, 0
          %v420 = vsel %vm409, 1, 0
          %vm421 = vcmp.eq.s32.totalorder %v419, 1
          %vm422 = vcmp.eq.s32.totalorder %v420, 1
          %v423 = vsel %vm421, %v418, 0.0
          %v424 = vsel %vm422, %v417, 0.0
          %v425 = vpack.c.bf16 %v424, %v423
          %v426 = vrot.slane %v412, 1
          %v427 = vrot.slane %v413, 1
          %vm428 = vcmp.lt.s32.totalorder %v382, 7
          %v429 = vsel %vm428, %v426, %v427
          %v430 = vsel %vm428, %v427, %v426
          %v431 = vsel %vm410, 1, 0
          %v432 = vsel %vm411, 1, 0
          %vm433 = vcmp.eq.s32.totalorder %v431, 1
          %vm434 = vcmp.eq.s32.totalorder %v432, 1
          %v435 = vsel %vm433, %v429, 0.0
          %v436 = vsel %vm434, %v430, 0.0
          %v437 = vpack.c.bf16 %v436, %v435
          %s438 = smul.u32 %s28, 3
          %s439 = smul.addr %s438, 4
          %s440 = scalar_lea.vmem %s3, %s439
          %v441 = vld [vmem:[%s440] sm:$0xf]
          %v442 = vld [vmem:[%s440 + $0x4] sm:$0xf]
          %v443 = vld [vmem:[%s440 + $0x8] sm:$0xf]
          %v446 = vunpack.c.l.b16 %v379
          %v447 = vunpack.c.l.b16 %v380
          %v448 = vpack.c.b16 %v447, %v446
          %vm449 = vcmask 64512
          %v451 = vsel %vm449, %v448, 0
          %vm453 = vcmask 1043456
          %v455 = vsel %vm453, %v442, 0
          %457 = vmatprep.subr.bf16.mxu0 0
          %458 = vmatpush1.bf16.msra.mxu0 %v455
          %459 = vmatprep.subr.bf16.mxu0 0
          %460 = vmatpush1.bf16.msra.mxu0 0
          %461 = vmatprep.subr.bf16.mxu0 0
          %462 = vmatpush1.bf16.msra.mxu0 0
          %463 = vmatprep.subr.bf16.mxu0 0
          %464 = vmatpush1.bf16.msra.mxu0 0
          %465 = vmatprep.subr.bf16.mxu0 0
          %466 = vmatpush1.bf16.msra.mxu0 0
          %467 = vmatprep.subr.bf16.mxu0 0
          %468 = vmatpush1.bf16.msra.mxu0 0
          %469 = vmatprep.subr.bf16.mxu0 0
          %470 = vmatpush1.bf16.msra.mxu0 0
          %471 = vmatprep.subr.bf16.mxu0 0
          %472 = vmatpush1.bf16.msra.mxu0 0
          %473 = vmatprep.subr.bf16.mxu0 0
          %474 = vmatpush1.bf16.msra.mxu0 0
          %475 = vmatprep.subr.bf16.mxu0 0
          %476 = vmatpush1.bf16.msra.mxu0 0
          %477 = vmatprep.subr.bf16.mxu0 0
          %478 = vmatpush1.bf16.msra.mxu0 0
          %479 = vmatprep.subr.bf16.mxu0 0
          %480 = vmatpush1.bf16.msra.mxu0 0
          %481 = vmatprep.subr.bf16.mxu0 0
          %482 = vmatpush1.bf16.msra.mxu0 0
          %483 = vmatprep.subr.bf16.mxu0 0
          %484 = vmatpush1.bf16.msra.mxu0 0
          %485 = vmatprep.subr.bf16.mxu0 0
          %486 = vmatpush1.bf16.msra.mxu0 0
          %487 = vmatprep.subr.bf16.mxu0 0
          %488 = vmatpush1.bf16.msra.mxu0 0
          %489 = vmatprep.mubr.bf16.mxu0 0
          %490 = vmatmul.mubr.bf16.gmra.mrb[0].mxu0 %v451
          %v491 = vpop.f32.mrb[0].mxu0
          %v492 = vadd.f32 0.0, %v491
          %v493 = vpop.f32.mrb[0].mxu0
          %v494 = vpop.f32.mrb[0].mxu0
          %v495 = vadd.f32 0.0, %v494
          %v496 = vpop.f32.mrb[0].mxu0
          %497 = vdwg.mxu0
          %v499 = vsel %vm449, %v425, 0
          %v502 = vsel %vm453, %v441, 0
          %504 = vmatprep.subr.bf16.mxu0 0
          %505 = vmatpush1.bf16.msra.mxu0 %v502
          %506 = vmatprep.subr.bf16.mxu0 0
          %507 = vmatpush1.bf16.msra.mxu0 0
          %508 = vmatprep.subr.bf16.mxu0 0
          %509 = vmatpush1.bf16.msra.mxu0 0
          %510 = vmatprep.subr.bf16.mxu0 0
          %511 = vmatpush1.bf16.msra.mxu0 0
          %512 = vmatprep.subr.bf16.mxu0 0
          %513 = vmatpush1.bf16.msra.mxu0 0
          %514 = vmatprep.subr.bf16.mxu0 0
          %515 = vmatpush1.bf16.msra.mxu0 0
          %516 = vmatprep.subr.bf16.mxu0 0
          %517 = vmatpush1.bf16.msra.mxu0 0
          %518 = vmatprep.subr.bf16.mxu0 0
          %519 = vmatpush1.bf16.msra.mxu0 0
          %520 = vmatprep.subr.bf16.mxu0 0
          %521 = vmatpush1.bf16.msra.mxu0 0
          %522 = vmatprep.subr.bf16.mxu0 0
          %523 = vmatpush1.bf16.msra.mxu0 0
          %524 = vmatprep.subr.bf16.mxu0 0
          %525 = vmatpush1.bf16.msra.mxu0 0
          %526 = vmatprep.subr.bf16.mxu0 0
          %527 = vmatpush1.bf16.msra.mxu0 0
          %528 = vmatprep.subr.bf16.mxu0 0
          %529 = vmatpush1.bf16.msra.mxu0 0
          %530 = vmatprep.subr.bf16.mxu0 0
          %531 = vmatpush1.bf16.msra.mxu0 0
          %532 = vmatprep.subr.bf16.mxu0 0
          %533 = vmatpush1.bf16.msra.mxu0 0
          %534 = vmatprep.subr.bf16.mxu0 0
          %535 = vmatpush1.bf16.msra.mxu0 0
          %536 = vmatprep.mubr.bf16.mxu0 0
          %537 = vmatmul.mubr.bf16.gmra.mrb[0].mxu0 %v499
          %v538 = vpop.f32.mrb[0].mxu0
          %v539 = vadd.f32 %v492, %v538
          %v540 = vpop.f32.mrb[0].mxu0
          %v541 = vpop.f32.mrb[0].mxu0
          %v542 = vadd.f32 %v495, %v541
          %v543 = vpop.f32.mrb[0].mxu0
          %544 = vdwg.mxu0
          %v546 = vsel %vm449, %v437, 0
          %v549 = vsel %vm453, %v443, 0
          %551 = vmatprep.subr.bf16.mxu0 0
          %552 = vmatpush1.bf16.msra.mxu0 %v549
          %553 = vmatprep.subr.bf16.mxu0 0
          %554 = vmatpush1.bf16.msra.mxu0 0
          %555 = vmatprep.subr.bf16.mxu0 0
          %556 = vmatpush1.bf16.msra.mxu0 0
          %557 = vmatprep.subr.bf16.mxu0 0
          %558 = vmatpush1.bf16.msra.mxu0 0
          %559 = vmatprep.subr.bf16.mxu0 0
          %560 = vmatpush1.bf16.msra.mxu0 0
          %561 = vmatprep.subr.bf16.mxu0 0
          %562 = vmatpush1.bf16.msra.mxu0 0
          %563 = vmatprep.subr.bf16.mxu0 0
          %564 = vmatpush1.bf16.msra.mxu0 0
          %565 = vmatprep.subr.bf16.mxu0 0
          %566 = vmatpush1.bf16.msra.mxu0 0
          %567 = vmatprep.subr.bf16.mxu0 0
          %568 = vmatpush1.bf16.msra.mxu0 0
          %569 = vmatprep.subr.bf16.mxu0 0
          %570 = vmatpush1.bf16.msra.mxu0 0
          %571 = vmatprep.subr.bf16.mxu0 0
          %572 = vmatpush1.bf16.msra.mxu0 0
          %573 = vmatprep.subr.bf16.mxu0 0
          %574 = vmatpush1.bf16.msra.mxu0 0
          %575 = vmatprep.subr.bf16.mxu0 0
          %576 = vmatpush1.bf16.msra.mxu0 0
          %577 = vmatprep.subr.bf16.mxu0 0
          %578 = vmatpush1.bf16.msra.mxu0 0
          %579 = vmatprep.subr.bf16.mxu0 0
          %580 = vmatpush1.bf16.msra.mxu0 0
          %581 = vmatprep.subr.bf16.mxu0 0
          %582 = vmatpush1.bf16.msra.mxu0 0
          %583 = vmatprep.mubr.bf16.mxu0 0
          %584 = vmatmul.mubr.bf16.gmra.mrb[0].mxu0 %v546
          %v585 = vpop.f32.mrb[0].mxu0
          %v586 = vadd.f32 0.0, %v585
          %v587 = vpop.f32.mrb[0].mxu0
          %v588 = vpop.f32.mrb[0].mxu0
          %v589 = vadd.f32 0.0, %v588
          %v590 = vpop.f32.mrb[0].mxu0
          %591 = vdwg.mxu0
          %v592 = vadd.f32 %v539, %v586
          %v593 = vadd.f32 %v542, %v589
          %s594 = scalar_lea.vmem %s4, %s28
          %v595 = vld [vmem:[%s594] sm:$0x1]
          %v597 = vlaneseq
          %v598 = vshrl.u32 %v597, 7
          %v599 = vsub.s32 0, %v598
          %v600 = vrot.slane %v595, %v599
          %v602 = vadd.f32 %v592, %v600
          %v603 = vadd.f32 %v593, %v600
          %v604 = vmax.f32 %v602, 0.0
          %v605 = vmax.f32 %v603, 0.0
          %v606 = vpack.c.bf16 %v605, %v604
          %v607 = vrot.slane %v604, 7
          %v608 = vrot.slane %v605, 7
          %v609 = vsel %vm416, %v607, %v608
          %v610 = vsel %vm416, %v608, %v607
          %v611 = vsel %vm421, %v610, 0.0
          %v612 = vsel %vm422, %v609, 0.0
          %v613 = vpack.c.bf16 %v612, %v611
          %v614 = vrot.slane %v604, 1
          %v615 = vrot.slane %v605, 1
          %v616 = vsel %vm428, %v614, %v615
          %v617 = vsel %vm428, %v615, %v614
          %v618 = vsel %vm433, %v616, 0.0
          %v619 = vsel %vm434, %v617, 0.0
          %v620 = vpack.c.bf16 %v619, %v618
          %s621 = smul.addr %s438, 4
          %s622 = scalar_lea.vmem %s5, %s621
          %v623 = vld [vmem:[%s622] sm:$0xf]
          %v624 = vld [vmem:[%s622 + $0x4] sm:$0xf]
          %v625 = vld [vmem:[%s622 + $0x8] sm:$0xf]
          %v627 = vsel %vm449, %v606, 0
          %v630 = vsel %vm453, %v624, 0
          %632 = vmatprep.subr.bf16.mxu0 0
          %633 = vmatpush1.bf16.msra.mxu0 %v630
          %634 = vmatprep.subr.bf16.mxu0 0
          %635 = vmatpush1.bf16.msra.mxu0 0
          %636 = vmatprep.subr.bf16.mxu0 0
          %637 = vmatpush1.bf16.msra.mxu0 0
          %638 = vmatprep.subr.bf16.mxu0 0
          %639 = vmatpush1.bf16.msra.mxu0 0
          %640 = vmatprep.subr.bf16.mxu0 0
          %641 = vmatpush1.bf16.msra.mxu0 0
          %642 = vmatprep.subr.bf16.mxu0 0
          %643 = vmatpush1.bf16.msra.mxu0 0
          %644 = vmatprep.subr.bf16.mxu0 0
          %645 = vmatpush1.bf16.msra.mxu0 0
          %646 = vmatprep.subr.bf16.mxu0 0
          %647 = vmatpush1.bf16.msra.mxu0 0
          %648 = vmatprep.subr.bf16.mxu0 0
          %649 = vmatpush1.bf16.msra.mxu0 0
          %650 = vmatprep.subr.bf16.mxu0 0
          %651 = vmatpush1.bf16.msra.mxu0 0
          %652 = vmatprep.subr.bf16.mxu0 0
          %653 = vmatpush1.bf16.msra.mxu0 0
          %654 = vmatprep.subr.bf16.mxu0 0
          %655 = vmatpush1.bf16.msra.mxu0 0
          %656 = vmatprep.subr.bf16.mxu0 0
          %657 = vmatpush1.bf16.msra.mxu0 0
          %658 = vmatprep.subr.bf16.mxu0 0
          %659 = vmatpush1.bf16.msra.mxu0 0
          %660 = vmatprep.subr.bf16.mxu0 0
          %661 = vmatpush1.bf16.msra.mxu0 0
          %662 = vmatprep.subr.bf16.mxu0 0
          %663 = vmatpush1.bf16.msra.mxu0 0
          %664 = vmatprep.mubr.bf16.mxu0 0
          %665 = vmatmul.mubr.bf16.gmra.mrb[0].mxu0 %v627
          %v666 = vpop.f32.mrb[0].mxu0
          %v667 = vadd.f32 0.0, %v666
          %v668 = vpop.f32.mrb[0].mxu0
          %v669 = vpop.f32.mrb[0].mxu0
          %v670 = vadd.f32 0.0, %v669
          %v671 = vpop.f32.mrb[0].mxu0
          %672 = vdwg.mxu0
          %v674 = vsel %vm449, %v613, 0
          %v677 = vsel %vm453, %v623, 0
          %679 = vmatprep.subr.bf16.mxu0 0
          %680 = vmatpush1.bf16.msra.mxu0 %v677
          %681 = vmatprep.subr.bf16.mxu0 0
          %682 = vmatpush1.bf16.msra.mxu0 0
          %683 = vmatprep.subr.bf16.mxu0 0
          %684 = vmatpush1.bf16.msra.mxu0 0
          %685 = vmatprep.subr.bf16.mxu0 0
          %686 = vmatpush1.bf16.msra.mxu0 0
          %687 = vmatprep.subr.bf16.mxu0 0
          %688 = vmatpush1.bf16.msra.mxu0 0
          %689 = vmatprep.subr.bf16.mxu0 0
          %690 = vmatpush1.bf16.msra.mxu0 0
          %691 = vmatprep.subr.bf16.mxu0 0
          %692 = vmatpush1.bf16.msra.mxu0 0
          %693 = vmatprep.subr.bf16.mxu0 0
          %694 = vmatpush1.bf16.msra.mxu0 0
          %695 = vmatprep.subr.bf16.mxu0 0
          %696 = vmatpush1.bf16.msra.mxu0 0
          %697 = vmatprep.subr.bf16.mxu0 0
          %698 = vmatpush1.bf16.msra.mxu0 0
          %699 = vmatprep.subr.bf16.mxu0 0
          %700 = vmatpush1.bf16.msra.mxu0 0
          %701 = vmatprep.subr.bf16.mxu0 0
          %702 = vmatpush1.bf16.msra.mxu0 0
          %703 = vmatprep.subr.bf16.mxu0 0
          %704 = vmatpush1.bf16.msra.mxu0 0
          %705 = vmatprep.subr.bf16.mxu0 0
          %706 = vmatpush1.bf16.msra.mxu0 0
          %707 = vmatprep.subr.bf16.mxu0 0
          %708 = vmatpush1.bf16.msra.mxu0 0
          %709 = vmatprep.subr.bf16.mxu0 0
          %710 = vmatpush1.bf16.msra.mxu0 0
          %711 = vmatprep.mubr.bf16.mxu0 0
          %712 = vmatmul.mubr.bf16.gmra.mrb[0].mxu0 %v674
          %v713 = vpop.f32.mrb[0].mxu0
          %v714 = vadd.f32 %v667, %v713
          %v715 = vpop.f32.mrb[0].mxu0
          %v716 = vpop.f32.mrb[0].mxu0
          %v717 = vadd.f32 %v670, %v716
          %v718 = vpop.f32.mrb[0].mxu0
          %719 = vdwg.mxu0
          %v721 = vsel %vm449, %v620, 0
          %v724 = vsel %vm453, %v625, 0
          %726 = vmatprep.subr.bf16.mxu0 0
          %727 = vmatpush1.bf16.msra.mxu0 %v724
          %728 = vmatprep.subr.bf16.mxu0 0
          %729 = vmatpush1.bf16.msra.mxu0 0
          %730 = vmatprep.subr.bf16.mxu0 0
          %731 = vmatpush1.bf16.msra.mxu0 0
          %732 = vmatprep.subr.bf16.mxu0 0
          %733 = vmatpush1.bf16.msra.mxu0 0
          %734 = vmatprep.subr.bf16.mxu0 0
          %735 = vmatpush1.bf16.msra.mxu0 0
          %736 = vmatprep.subr.bf16.mxu0 0
          %737 = vmatpush1.bf16.msra.mxu0 0
          %738 = vmatprep.subr.bf16.mxu0 0
          %739 = vmatpush1.bf16.msra.mxu0 0
          %740 = vmatprep.subr.bf16.mxu0 0
          %741 = vmatpush1.bf16.msra.mxu0 0
          %742 = vmatprep.subr.bf16.mxu0 0
          %743 = vmatpush1.bf16.msra.mxu0 0
          %744 = vmatprep.subr.bf16.mxu0 0
          %745 = vmatpush1.bf16.msra.mxu0 0
          %746 = vmatprep.subr.bf16.mxu0 0
          %747 = vmatpush1.bf16.msra.mxu0 0
          %748 = vmatprep.subr.bf16.mxu0 0
          %749 = vmatpush1.bf16.msra.mxu0 0
          %750 = vmatprep.subr.bf16.mxu0 0
          %751 = vmatpush1.bf16.msra.mxu0 0
          %752 = vmatprep.subr.bf16.mxu0 0
          %753 = vmatpush1.bf16.msra.mxu0 0
          %754 = vmatprep.subr.bf16.mxu0 0
          %755 = vmatpush1.bf16.msra.mxu0 0
          %756 = vmatprep.subr.bf16.mxu0 0
          %757 = vmatpush1.bf16.msra.mxu0 0
          %758 = vmatprep.mubr.bf16.mxu0 0
          %759 = vmatmul.mubr.bf16.gmra.mrb[0].mxu0 %v721
          %v760 = vpop.f32.mrb[0].mxu0
          %v761 = vadd.f32 0.0, %v760
          %v762 = vpop.f32.mrb[0].mxu0
          %v763 = vpop.f32.mrb[0].mxu0
          %v764 = vadd.f32 0.0, %v763
          %v765 = vpop.f32.mrb[0].mxu0
          %766 = vdwg.mxu0
          %v767 = vadd.f32 %v714, %v761
          %v768 = vadd.f32 %v717, %v764
          %s769 = smul.addr %s28, 4
          %s770 = scalar_lea.vmem %s7, %s769
          %v771 = vld [vmem:[%s770] sm:$0xf]
          %v773 = vsel %vm453, %v771, 0
          %775 = vmatprep.subr.bf16.mxu0 0
          %776 = vmatpush1.bf16.msra.mxu0 %v773
          %777 = vmatprep.subr.bf16.mxu0 0
          %778 = vmatpush1.bf16.msra.mxu0 0
          %779 = vmatprep.subr.bf16.mxu0 0
          %780 = vmatpush1.bf16.msra.mxu0 0
          %781 = vmatprep.subr.bf16.mxu0 0
          %782 = vmatpush1.bf16.msra.mxu0 0
          %783 = vmatprep.subr.bf16.mxu0 0
          %784 = vmatpush1.bf16.msra.mxu0 0
          %785 = vmatprep.subr.bf16.mxu0 0
          %786 = vmatpush1.bf16.msra.mxu0 0
          %787 = vmatprep.subr.bf16.mxu0 0
          %788 = vmatpush1.bf16.msra.mxu0 0
          %789 = vmatprep.subr.bf16.mxu0 0
          %790 = vmatpush1.bf16.msra.mxu0 0
          %791 = vmatprep.subr.bf16.mxu0 0
          %792 = vmatpush1.bf16.msra.mxu0 0
          %793 = vmatprep.subr.bf16.mxu0 0
          %794 = vmatpush1.bf16.msra.mxu0 0
          %795 = vmatprep.subr.bf16.mxu0 0
          %796 = vmatpush1.bf16.msra.mxu0 0
          %797 = vmatprep.subr.bf16.mxu0 0
          %798 = vmatpush1.bf16.msra.mxu0 0
          %799 = vmatprep.subr.bf16.mxu0 0
          %800 = vmatpush1.bf16.msra.mxu0 0
          %801 = vmatprep.subr.bf16.mxu0 0
          %802 = vmatpush1.bf16.msra.mxu0 0
          %803 = vmatprep.subr.bf16.mxu0 0
          %804 = vmatpush1.bf16.msra.mxu0 0
          %805 = vmatprep.subr.bf16.mxu0 0
          %806 = vmatpush1.bf16.msra.mxu0 0
          %807 = vmatprep.mubr.bf16.mxu0 0
          %808 = vmatmul.mubr.bf16.gmra.mrb[0].mxu0 %v451
          %v809 = vpop.f32.mrb[0].mxu0
          %v810 = vadd.f32 0.0, %v809
          %v811 = vpop.f32.mrb[0].mxu0
          %v812 = vpop.f32.mrb[0].mxu0
          %v813 = vadd.f32 0.0, %v812
          %v814 = vpop.f32.mrb[0].mxu0
          %815 = vdwg.mxu0
          %v816 = vadd.f32 %v767, %v810
          %v817 = vadd.f32 %v768, %v813
          %s818 = scalar_lea.vmem %s6, %s28
          %v819 = vld [vmem:[%s818] sm:$0x1]
          %v821 = vlaneseq
          %v822 = vshrl.u32 %v821, 7
          %v823 = vsub.s32 0, %v822
          %v824 = vrot.slane %v819, %v823
          %v826 = vadd.f32 %v816, %v824
          %v827 = vadd.f32 %v817, %v824
          %v828 = vmax.f32 %v826, 0.0
          %v829 = vmax.f32 %v827, 0.0
          %v830 = vld [vmem:[#allocation2] sm:$0xff]
          %v831 = vld [vmem:[#allocation2 + $0x8] sm:$0xff]
          %v832 = vld [vmem:[%s358] sm:$0xff]
          %v833 = vld [vmem:[%s358 + $0x8] sm:$0xff]
          %835 = vset.pattern.permute.xlu0 0
          %836 = vperm.xlu0 %835, %v832
          %v837 = vpop.permute.xlu0 %836
          %840 = vset.pattern.permute.xlu0 0
          %841 = vperm.xlu0 %840, %v833
          %v842 = vpop.permute.xlu0 %841
          %v844 = vmul.f32 %v837, %v828
          %v845 = vmul.f32 %v842, %v829
          %v846 = vadd.f32 %v830, %v844
          %v847 = vadd.f32 %v831, %v845
          %vm848 = vcmask 130048
          %849 = vst.msk [vmem:[#allocation2] sm:$0xff] %vm848, %v846
          %850 = vst.msk [vmem:[#allocation2 + $0x8] sm:$0xff] %vm848, %v847
        $region64: #{tpu_custom_call.1} parent=51 // pred_fallthru
          _
        %p851 = scmp.eq.s32.totalorder %s28, 3
        // Predicated region
        $region65: #{tpu_custom_call.1} parent=51 // pred_check
          %p852 = pneg %p851
        $region66: #{tpu_custom_call.1} parent=51 // pred_check_branch
          %854 = sbr.rel (%p852) target = $region68
        $region67: #{tpu_custom_call.1} parent=51 // pred_region
          %v855 = vld [vmem:[#allocation2] sm:$0xff]
          %v856 = vld [vmem:[#allocation2 + $0x8] sm:$0xff]
          %vm857 = vcmask 130048
          %858 = vst.msk [vmem:[%s349] sm:$0xff] %vm857, %v855
          %859 = vst.msk [vmem:[%s349 + $0x8] sm:$0xff] %vm857, %v856
        $region68: #{tpu_custom_call.1} parent=51 // pred_fallthru
          _
        %s860 = sand.u32 %s223, 1
        %s861 = scalar_lea.sflag [#allocation4], %s860
        %s862 = sand.u32 %s223, 1
        %s863 = smul.addr %s862, 16
        %s864 = scalar_lea.vmem [#allocation6], %s863
        // Predicated region
        $region69: #{tpu_custom_call.1} parent=51 // pred_check
          %p865 = pneg %p233
        $region70: #{tpu_custom_call.1} parent=51 // pred_check_branch
          %867 = sbr.rel (%p865) target = $region72
        $region71: #{tpu_custom_call.1} parent=51 // pred_region
          %s869 = ssub.s32 256, 256
          %870 = vsyncadd %s861, %s869
          %s871 = smul.addr %s27, 2
          %s872 = smul.addr %s871, 128
          %s873 = scalar_lea.hbm %s8, %s872
          %s874 = sshll.u32 %s864, 4
          %s875 = int_to_ptr.vmem [resolvable:$true] %s874
          %880 = dma.vmem_to_hbm [thread:$0]  %s875, 256, %s873, %s861, 128, 128, 8
        $region72: #{tpu_custom_call.1} parent=51 // pred_fallthru
          _
      $region52: #{tpu_custom_call.1} parent=5 // pred_fallthru
        _
      %p881 = scmp.le.s32.totalorder 2, %s18
      // Predicated region
      $region73: #{tpu_custom_call.1} parent=5 // pred_check
        %p882 = pneg %p881
      $region74: #{tpu_custom_call.1} parent=5 // pred_check_branch
        %884 = sbr.rel (%p882) target = $region76
      $region75: #{tpu_custom_call.1} parent=5 // pred_region
        %s885 = ssub.s32 %s18, 2
        // Predicated region
        $region77: #{tpu_custom_call.1} parent=75 // pred_check
          %p886 = pneg %p239
        $region78: #{tpu_custom_call.1} parent=75 // pred_check_branch
          %888 = sbr.rel (%p886) target = $region80
        $region79: #{tpu_custom_call.1} parent=75 // pred_region
          %s889 = sand.u32 %s224, 1
          %s890 = scalar_lea.sflag [#allocation4], %s889
          %s891 = sand.u32 %s224, 1
          %s892 = smul.addr %s891, 16
          %s893 = scalar_lea.vmem [#allocation6], %s892
          %894 = dma.done %s890, 256
        $region80: #{tpu_custom_call.1} parent=75 // pred_fallthru
          _
      $region76: #{tpu_custom_call.1} parent=5 // pred_fallthru
        _
    $region6: #{tpu_custom_call.1} parent=1 // loop_footer
      %s22 = sadd.s32 1, %s18
    $region7: #{tpu_custom_call.1} parent=1 // loop_footer_branch
      %17 = sbr.rel target = $region3
    $region8: #{tpu_custom_call.1} parent=1 // loop_exit
      _
    %895 = vsyncpa [#allocation4], 1
    %s896 = scalar_lea.sflag [#allocation4], 1
    %897 = vsyncpa %s896, 1
    %898 = vsyncpa [#allocation5], 1
    %s899 = scalar_lea.sflag [#allocation5], 1
    %900 = vsyncpa %s899, 1

</llo_original>
